<compile_context>
chip_gen: v7x
topology: tpu7x:2x2x1
jax: 0.10.0
libtpu: 0.0.40
codegen_flags: <defaults>
</compile_context>

<pallas_src>
from functools import partial

import jax
import jax.numpy as jnp
from jax.experimental import pallas as pl
from jax.experimental.pallas import tpu as pltpu


STATE_DIM = 16
HIDDEN = 32
LAST_SIZE = 1

MAX_TILE_B = 2048   # batch tile (lane axis); large enough to amortize per-step overhead,
                    # tiny vs VMEM on v5e/v6e (128 MiB) and v7x (64 MiB).


def _round_up(x, m):
    return ((x + m - 1) // m) * m


def _critic_kernel(x_ref, w1_ref, w23_ref, misc_ref, o_ref):
    # misc layout (f32, shape (HIDDEN, 8)):
    #   col 0: b1, col 1: b2, col 2: b3, col 3: w4 (final-layer weight vector),
    #   [0, 4]: b4.  All kept f32 (v5e VPU has no bf16).
    b1 = misc_ref[:, 0:1]            # (32, 1)
    b2 = misc_ref[:, 1:2]
    b3 = misc_ref[:, 2:3]
    w4 = misc_ref[:, 3:4]            # (32, 1)
    b4 = misc_ref[0:1, 4:5]          # (1, 1)

    x = x_ref[...]                   # (STATE_DIM, TILE_B) bf16

    # preprocess_net: Linear + ReLU, Linear + ReLU   (bf16 MXU, f32 accumulate)
    h = jnp.dot(w1_ref[...], x, preferred_element_type=jnp.float32) + b1
    h = jnp.maximum(h, 0.0)
    h = jnp.dot(w23_ref[0], h.astype(jnp.bfloat16),
                preferred_element_type=jnp.float32) + b2
    h = jnp.maximum(h, 0.0)

    # Critic.last hidden Linear + ReLU
    h = jnp.dot(w23_ref[1], h.astype(jnp.bfloat16),
                preferred_element_type=jnp.float32) + b3
    h = jnp.maximum(h, 0.0)

    # Final Linear(32 -> 1): VPU multiply + sublane reduction (skip an N=1 MXU matmul).
    o_ref[...] = (jnp.sum(w4 * h, axis=0, keepdims=True) + b4).astype(o_ref.dtype)


@jax.jit
def critic_forward(x, w1_p, w23_p, misc_p):
    """x: (batch, ...) -> V(s): (batch, LAST_SIZE). Flattens trailing dims like MLP."""
    batch = x.shape[0]
    x_flat = x.reshape(batch, -1)

    # Feature-major, bf16, padded to a multiple of the batch tile.
    tile_b = min(MAX_TILE_B, _round_up(batch, 128))
    b_pad = _round_up(batch, tile_b)
    xt = x_flat.T.astype(jnp.bfloat16)                       # (STATE_DIM, batch)
    xt = jnp.pad(xt, ((0, 0), (0, b_pad - batch)))           # (STATE_DIM, b_pad)

    n_tiles = pl.cdiv(b_pad, tile_b)

    flops = 2 * b_pad * (STATE_DIM * HIDDEN + 2 * HIDDEN * HIDDEN + HIDDEN * LAST_SIZE)
    bytes_accessed = (xt.size * 2 + w1_p.size * 2 + w23_p.size * 2
                      + misc_p.size * 4 + b_pad * LAST_SIZE * 4)

    out_t = pl.pallas_call(
        _critic_kernel,
        out_shape=jax.ShapeDtypeStruct((LAST_SIZE, b_pad), jnp.float32),
        grid=(n_tiles,),
        in_specs=[
            pl.BlockSpec((STATE_DIM, tile_b), lambda i: (0, i)),       # x tile
            pl.BlockSpec((HIDDEN, STATE_DIM), lambda i: (0, 0)),       # w1 (resident)
            pl.BlockSpec((2, HIDDEN, HIDDEN), lambda i: (0, 0, 0)),    # w2/w3 (resident)
            pl.BlockSpec((HIDDEN, 8), lambda i: (0, 0)),               # biases + w4/b4
        ],
        out_specs=pl.BlockSpec((LAST_SIZE, tile_b), lambda i: (0, i)),
        compiler_params=pltpu.CompilerParams(
            dimension_semantics=("parallel",)),                        # v7x: 2 TCs
        cost_estimate=pl.CostEstimate(flops=flops, transcendentals=0,
                                      bytes_accessed=bytes_accessed),
    )(xt, w1_p, w23_p, misc_p)

    return out_t[:, :batch].T                                          # (batch, LAST_SIZE)


def make_params(key):
    """Deterministic PyTorch-Linear-like init; weights stored as (out, in)."""
    dims = [(HIDDEN, STATE_DIM),     # preprocess layer 1
            (HIDDEN, HIDDEN),        # preprocess layer 2
            (HIDDEN, HIDDEN),        # Critic.last hidden layer
            (LAST_SIZE, HIDDEN)]     # Critic.last output layer
    params = []
    for i, (d_out, d_in) in enumerate(dims):
        kw, kb = jax.random.split(jax.random.fold_in(key, i))
        bound = 1.0 / (d_in ** 0.5)
        w = jax.random.uniform(kw, (d_out, d_in), jnp.float32, -bound, bound)
        b = jax.random.uniform(kb, (d_out,), jnp.float32, -bound, bound)
        params.append((w, b))
    return params


def pack_params(params):
    """Pack the 4 (w, b) pairs into 3 kernel inputs (bf16 weights, f32 misc)."""
    (w1, b1), (w2, b2), (w3, b3), (w4, b4) = params
    w1_p = w1.astype(jnp.bfloat16)                       # (HIDDEN, STATE_DIM)
    w23_p = jnp.stack([w2, w3]).astype(jnp.bfloat16)     # (2, HIDDEN, HIDDEN)
    misc = jnp.zeros((HIDDEN, 8), jnp.float32)
    misc = misc.at[:, 0].set(b1)
    misc = misc.at[:, 1].set(b2)
    misc = misc.at[:, 2].set(b3)
    misc = misc.at[:, 3].set(w4[0])                      # final-layer weights (f32, VPU path)
    misc = misc.at[0, 4].set(b4[0])
    return w1_p, w23_p, misc


def reference_forward(x, params):
    """Plain-JAX reference mirroring the kernel's dtype choices (bf16 MXU, f32 acc)."""
    (w1, b1), (w2, b2), (w3, b3), (w4, b4) = params
    h = x.reshape(x.shape[0], -1).astype(jnp.bfloat16)
    h = jnp.dot(h, w1.astype(jnp.bfloat16).T, preferred_element_type=jnp.float32) + b1
    h = jnp.maximum(h, 0.0)
    h = jnp.dot(h.astype(jnp.bfloat16), w2.astype(jnp.bfloat16).T,
                preferred_element_type=jnp.float32) + b2
    h = jnp.maximum(h, 0.0)
    h = jnp.dot(h.astype(jnp.bfloat16), w3.astype(jnp.bfloat16).T,
                preferred_element_type=jnp.float32) + b3
    h = jnp.maximum(h, 0.0)
    return h @ w4.T + b4                                  # final layer in f32


if __name__ == "__main__":
    key = jax.random.PRNGKey(0)
    k_x, k_p = jax.random.split(key)

    params = make_params(k_p)
    w1_p, w23_p, misc_p = pack_params(params)

    # batch=2 (spec-sized) plus a ragged batch to exercise padding/tiling.
    for batch in (2, 300):
        xb = jax.random.normal(jax.random.fold_in(k_x, batch),
                               (batch, STATE_DIM), jnp.float32)
        out = jax.block_until_ready(critic_forward(xb, w1_p, w23_p, misc_p))
        ref = reference_forward(xb, params)
        assert out.shape == (batch, LAST_SIZE)
        assert jnp.allclose(out, ref, atol=1e-3, rtol=1e-3), "mismatch vs reference"

    print("KERNEL_OK")
</pallas_src>

<mosaic_0001>
module attributes {stable_mosaic.version = 11 : i64} {
  func.func @_critic_kernel(%arg0: i32, %arg1: memref<16x128xbf16, #tpu.memory_space<vmem>>, %arg2: memref<32x16xbf16, #tpu.memory_space<vmem>>, %arg3: memref<2x32x32xbf16, #tpu.memory_space<vmem>>, %arg4: memref<32x8xf32, #tpu.memory_space<vmem>>, %arg5: memref<1x128xf32, #tpu.memory_space<vmem>>) attributes {dimension_semantics = [#tpu.dimension_semantics<parallel>], iteration_bounds = array<i64: 1>, scalar_prefetch = 0 : i64, scratch_operands = 0 : i64, tpu.core_type = #tpu.core_type<tc>, window_params = [{transform_indices = @transform_0, window_bounds = array<i64: 16, 128>}, {pipeline_mode = #tpu.pipeline_mode<synchronous>, transform_indices = @transform_1, window_bounds = array<i64: 32, 16>}, {pipeline_mode = #tpu.pipeline_mode<synchronous>, transform_indices = @transform_2, window_bounds = array<i64: 2, 32, 32>}, {pipeline_mode = #tpu.pipeline_mode<synchronous>, transform_indices = @transform_3, window_bounds = array<i64: 32, 8>}, {transform_indices = @transform_4, window_bounds = array<i64: 1, 128>}]} {
    %c0 = arith.constant 0 : index
    %c0_0 = arith.constant 0 : index
    %0 = vector.load %arg4[%c0, %c0_0] : memref<32x8xf32, #tpu.memory_space<vmem>>, vector<32x1xf32>
    %c0_1 = arith.constant 0 : index
    %c1 = arith.constant 1 : index
    %1 = vector.load %arg4[%c0_1, %c1] : memref<32x8xf32, #tpu.memory_space<vmem>>, vector<32x1xf32>
    %c0_2 = arith.constant 0 : index
    %c2 = arith.constant 2 : index
    %2 = vector.load %arg4[%c0_2, %c2] : memref<32x8xf32, #tpu.memory_space<vmem>>, vector<32x1xf32>
    %c0_3 = arith.constant 0 : index
    %c3 = arith.constant 3 : index
    %3 = vector.load %arg4[%c0_3, %c3] : memref<32x8xf32, #tpu.memory_space<vmem>>, vector<32x1xf32>
    %c0_4 = arith.constant 0 : index
    %c4 = arith.constant 4 : index
    %4 = vector.load %arg4[%c0_4, %c4] : memref<32x8xf32, #tpu.memory_space<vmem>>, vector<1x1xf32>
    %c0_5 = arith.constant 0 : index
    %c0_6 = arith.constant 0 : index
    %5 = vector.load %arg1[%c0_5, %c0_6] : memref<16x128xbf16, #tpu.memory_space<vmem>>, vector<16x128xbf16>
    %c0_7 = arith.constant 0 : index
    %c0_8 = arith.constant 0 : index
    %6 = vector.load %arg2[%c0_7, %c0_8] : memref<32x16xbf16, #tpu.memory_space<vmem>>, vector<32x16xbf16>
    %cst = arith.constant dense<0.000000e+00> : vector<32x128xf32>
    %7 = tpu.matmul %6, %5, %cst {dimension_numbers = #tpu.dot_dimension_numbers<[1], [0], [0], [1], [0, 0, 1, 1], [], []>} : vector<32x16xbf16>, vector<16x128xbf16>, vector<32x128xf32> -> vector<32x128xf32>
    %8 = vector.broadcast %0 : vector<32x1xf32> to vector<32x128xf32>
    %9 = arith.addf %7, %8 : vector<32x128xf32>
    %cst_9 = arith.constant 0.000000e+00 : f32
    %10 = vector.broadcast %cst_9 : f32 to vector<32x128xf32>
    %11 = arith.maximumf %9, %10 : vector<32x128xf32>
    %c0_10 = arith.constant 0 : index
    %c0_11 = arith.constant 0 : index
    %c0_12 = arith.constant 0 : index
    %12 = vector.load %arg3[%c0_10, %c0_11, %c0_12] : memref<2x32x32xbf16, #tpu.memory_space<vmem>>, vector<1x32x32xbf16>
    %13 = vector.shape_cast %12 : vector<1x32x32xbf16> to vector<32x32xbf16>
    %14 = arith.truncf %11 : vector<32x128xf32> to vector<32x128xbf16>
    %cst_13 = arith.constant dense<0.000000e+00> : vector<32x128xf32>
    %15 = tpu.matmul %13, %14, %cst_13 {dimension_numbers = #tpu.dot_dimension_numbers<[1], [0], [0], [1], [0, 0, 1, 1], [], []>} : vector<32x32xbf16>, vector<32x128xbf16>, vector<32x128xf32> -> vector<32x128xf32>
    %16 = vector.broadcast %1 : vector<32x1xf32> to vector<32x128xf32>
    %17 = arith.addf %15, %16 : vector<32x128xf32>
    %cst_14 = arith.constant 0.000000e+00 : f32
    %18 = vector.broadcast %cst_14 : f32 to vector<32x128xf32>
    %19 = arith.maximumf %17, %18 : vector<32x128xf32>
    %c1_15 = arith.constant 1 : index
    %c0_16 = arith.constant 0 : index
    %c0_17 = arith.constant 0 : index
    %20 = vector.load %arg3[%c1_15, %c0_16, %c0_17] : memref<2x32x32xbf16, #tpu.memory_space<vmem>>, vector<1x32x32xbf16>
    %21 = vector.shape_cast %20 : vector<1x32x32xbf16> to vector<32x32xbf16>
    %22 = arith.truncf %19 : vector<32x128xf32> to vector<32x128xbf16>
    %cst_18 = arith.constant dense<0.000000e+00> : vector<32x128xf32>
    %23 = tpu.matmul %21, %22, %cst_18 {dimension_numbers = #tpu.dot_dimension_numbers<[1], [0], [0], [1], [0, 0, 1, 1], [], []>} : vector<32x32xbf16>, vector<32x128xbf16>, vector<32x128xf32> -> vector<32x128xf32>
    %24 = vector.broadcast %2 : vector<32x1xf32> to vector<32x128xf32>
    %25 = arith.addf %23, %24 : vector<32x128xf32>
    %cst_19 = arith.constant 0.000000e+00 : f32
    %26 = vector.broadcast %cst_19 : f32 to vector<32x128xf32>
    %27 = arith.maximumf %25, %26 : vector<32x128xf32>
    %28 = vector.broadcast %3 : vector<32x1xf32> to vector<32x128xf32>
    %29 = arith.mulf %28, %27 : vector<32x128xf32>
    %cst_20 = arith.constant dense<0.000000e+00> : vector<128xf32>
    %30 = vector.multi_reduction <add>, %29, %cst_20 [0] : vector<32x128xf32> to vector<128xf32>
    %31 = vector.shape_cast %30 : vector<128xf32> to vector<1x128xf32>
    %32 = vector.broadcast %4 : vector<1x1xf32> to vector<1x128xf32>
    %33 = arith.addf %31, %32 : vector<1x128xf32>
    %c0_21 = arith.constant 0 : index
    %c0_22 = arith.constant 0 : index
    %34 = vector.load %arg5[%c0_21, %c0_22] : memref<1x128xf32, #tpu.memory_space<vmem>>, vector<1x128xf32>
    tpu.vector_store %arg5[%c0_21, %c0_22], %33 {strides = array<i32>} : memref<1x128xf32, #tpu.memory_space<vmem>>, vector<1x128xf32>,
    return
  }
  func.func @transform_0(%arg0: i32) -> (i32, i32) {
    %c0_i32 = arith.constant 0 : i32
    %c0_i32_0 = arith.constant 0 : i32
    return %c0_i32, %arg0 : i32, i32
  }
  func.func @transform_1(%arg0: i32) -> (i32, i32) {
    %c0_i32 = arith.constant 0 : i32
    %c0_i32_0 = arith.constant 0 : i32
    %c0_i32_1 = arith.constant 0 : i32
    return %c0_i32, %c0_i32_0 : i32, i32
  }
  func.func @transform_2(%arg0: i32) -> (i32, i32, i32) {
    %c0_i32 = arith.constant 0 : i32
    %c0_i32_0 = arith.constant 0 : i32
    %c0_i32_1 = arith.constant 0 : i32
    %c0_i32_2 = arith.constant 0 : i32
    return %c0_i32, %c0_i32_0, %c0_i32_1 : i32, i32, i32
  }
  func.func @transform_3(%arg0: i32) -> (i32, i32) {
    %c0_i32 = arith.constant 0 : i32
    %c0_i32_0 = arith.constant 0 : i32
    %c0_i32_1 = arith.constant 0 : i32
    return %c0_i32, %c0_i32_0 : i32, i32
  }
  func.func @transform_4(%arg0: i32) -> (i32, i32) {
    %c0_i32 = arith.constant 0 : i32
    %c0_i32_0 = arith.constant 0 : i32
    return %c0_i32, %arg0 : i32, i32
  }
}

</mosaic_0001>

<llo_original>
// kernel: critic_forward.1
$region0: #{critic_forward.1}
  #allocation0 [shape = 'u32[]', space=smem, size = 0x4, offset = 0x4, fixed_abs, tag = 'smem constant byte address 0x4 - core index']
  #allocation1 [shape = 'u32[144,128]{1,0:T(1,128)}', space=vmem, size = 0x12000, scoped, tag = 'internal scratch']
  %s0 = inlined_call_operand.vmem [shape: bf16[16,128], index: 0, kind: input, shape index: {}]
  %s1 = inlined_call_operand.vmem [shape: bf16[32,16], index: 1, kind: input, shape index: {}]
  %s2 = inlined_call_operand.vmem [shape: bf16[2,32,32], index: 2, kind: input, shape index: {}]
  %s3 = inlined_call_operand.vmem [shape: f32[32,8], index: 3, kind: input, shape index: {}]
  %s4 = inlined_call_operand.vmem [shape: f32[1,128], index: 4, kind: output, shape index: {}]
  %s5 = sld [smem:[#allocation0]]
  $region26: #{critic_forward.1} parent=0
    _
  %s7 = ssub.s32 1, %s5
  %s8 = scalar_select 0, %s7, %s5
  // Predicated region
  $region2: #{critic_forward.1} parent=0 // pred_check
    _
  $region3: #{critic_forward.1} parent=0 // pred_check_branch
    %10 = sbr.rel (0) target = $region5
  $region4: #{critic_forward.1} parent=0 // pred_region
    _
  $region5: #{critic_forward.1} parent=0 // pred_fallthru
    _
  // Predicated region
  $region6: #{critic_forward.1} parent=0 // pred_check
    _
  $region7: #{critic_forward.1} parent=0 // pred_check_branch
    %12 = sbr.rel (0) target = $region9
  $region8: #{critic_forward.1} parent=0 // pred_region
    _
  $region9: #{critic_forward.1} parent=0 // pred_fallthru
    _
  // Predicated region
  $region10: #{critic_forward.1} parent=0 // pred_check
    _
  $region11: #{critic_forward.1} parent=0 // pred_check_branch
    %14 = sbr.rel (0) target = $region13
  $region12: #{critic_forward.1} parent=0 // pred_region
    _
  $region13: #{critic_forward.1} parent=0 // pred_fallthru
    _
  // Predicated region
  $region14: #{critic_forward.1} parent=0 // pred_check
    _
  $region15: #{critic_forward.1} parent=0 // pred_check_branch
    %16 = sbr.rel (0) target = $region17
  $region16: #{critic_forward.1} parent=0 // pred_region
    _
  $region17: #{critic_forward.1} parent=0 // pred_fallthru
    _
  %v18 = vld [vmem:[%s3] sm:$0xff]
  %v19 = vld [vmem:[%s3 + $0x8] sm:$0xff]
  %v20 = vld [vmem:[%s3 + $0x10] sm:$0xff]
  %v21 = vld [vmem:[%s3 + $0x18] sm:$0xff]
  %v22 = vld [vmem:[%s3] sm:$0x1]
  %v23 = vld [vmem:[%s0] sm:$0xf]
  %v24 = vld [vmem:[%s0 + $0x4] sm:$0xf]
  %v25 = vld [vmem:[%s1] sm:$0xf]
  %v26 = vld [vmem:[%s1 + $0x4] sm:$0xf]
  %v27 = vld [vmem:[%s1 + $0x8] sm:$0xf]
  %v28 = vld [vmem:[%s1 + $0xc] sm:$0xf]
  %30 = vset.pattern.permute.xlu0 0
  %31 = vperm.xlu0 %30, %v18
  %v32 = vpop.permute.xlu0 %31
  %35 = vset.pattern.permute.xlu0 0
  %36 = vperm.xlu0 %35, %v19
  %v37 = vpop.permute.xlu0 %36
  %40 = vset.pattern.permute.xlu0 0
  %41 = vperm.xlu0 %40, %v20
  %v42 = vpop.permute.xlu0 %41
  %45 = vset.pattern.permute.xlu0 0
  %46 = vperm.xlu0 %45, %v21
  %v47 = vpop.permute.xlu0 %46
  %v53 = vunpack.c.l.b16 %v25
  %v54 = vunpack.c.l.b16 %v26
  %v55 = vunpack.c.l.b16 %v27
  %v56 = vunpack.c.l.b16 %v28
  %v57 = vpack.c.b16 %v54, %v53
  %v58 = vpack.c.b16 %v56, %v55
  %v61 = vunpack.c.l.b16 %v23
  %v62 = vunpack.c.l.b16 %v24
  %v63 = vpack.c.b16 %v62, %v61
  %vm65 = vcmask 130048
  %v67 = vsel %vm65, %v57, 0
  %v70 = vsel %vm65, %v58, 0
  %72 = vmatprep.subr.bf16.mxu0 0
  %73 = vmatpush1.bf16.msra.mxu0 %v63
  %74 = vmatprep.subr.bf16.mxu0 0
  %75 = vmatpush1.bf16.msra.mxu0 0
  %76 = vmatprep.subr.bf16.mxu0 0
  %77 = vmatpush1.bf16.msra.mxu0 0
  %78 = vmatprep.subr.bf16.mxu0 0
  %79 = vmatpush1.bf16.msra.mxu0 0
  %80 = vmatprep.subr.bf16.mxu0 0
  %81 = vmatpush1.bf16.msra.mxu0 0
  %82 = vmatprep.subr.bf16.mxu0 0
  %83 = vmatpush1.bf16.msra.mxu0 0
  %84 = vmatprep.subr.bf16.mxu0 0
  %85 = vmatpush1.bf16.msra.mxu0 0
  %86 = vmatprep.subr.bf16.mxu0 0
  %87 = vmatpush1.bf16.msra.mxu0 0
  %88 = vmatprep.subr.bf16.mxu0 0
  %89 = vmatpush1.bf16.msra.mxu0 0
  %90 = vmatprep.subr.bf16.mxu0 0
  %91 = vmatpush1.bf16.msra.mxu0 0
  %92 = vmatprep.subr.bf16.mxu0 0
  %93 = vmatpush1.bf16.msra.mxu0 0
  %94 = vmatprep.subr.bf16.mxu0 0
  %95 = vmatpush1.bf16.msra.mxu0 0
  %96 = vmatprep.subr.bf16.mxu0 0
  %97 = vmatpush1.bf16.msra.mxu0 0
  %98 = vmatprep.subr.bf16.mxu0 0
  %99 = vmatpush1.bf16.msra.mxu0 0
  %100 = vmatprep.subr.bf16.mxu0 0
  %101 = vmatpush1.bf16.msra.mxu0 0
  %102 = vmatprep.subr.bf16.mxu0 0
  %103 = vmatpush1.bf16.msra.mxu0 0
  %104 = vmatprep.mubr.bf16.mxu0 0
  %105 = vmatmul.mubr.bf16.gmra.mrb[0].mxu0 %v67
  %v106 = vpop.f32.mrb[0].mxu0
  %v107 = vadd.f32 %v32, %v106
  %v108 = vpop.f32.mrb[0].mxu0
  %v109 = vpop.f32.mrb[0].mxu0
  %v110 = vadd.f32 %v37, %v109
  %v111 = vpop.f32.mrb[0].mxu0
  %112 = vmatprep.mubr.bf16.mxu0 0
  %113 = vmatmul.mubr.bf16.gmra.mrb[0].mxu0 %v70
  %v114 = vpop.f32.mrb[0].mxu0
  %v115 = vadd.f32 %v42, %v114
  %v116 = vpop.f32.mrb[0].mxu0
  %v117 = vpop.f32.mrb[0].mxu0
  %v118 = vadd.f32 %v47, %v117
  %v119 = vpop.f32.mrb[0].mxu0
  %120 = vdwg.mxu0
  %v121 = vmax.f32 %v107, 0.0
  %v122 = vmax.f32 %v110, 0.0
  %v123 = vmax.f32 %v115, 0.0
  %v124 = vmax.f32 %v118, 0.0
  %v125 = vld [vmem:[%s2] sm:$0xf]
  %v126 = vld [vmem:[%s2 + $0x4] sm:$0xf]
  %v127 = vld [vmem:[%s2 + $0x8] sm:$0xf]
  %v128 = vld [vmem:[%s2 + $0xc] sm:$0xf]
  %v129 = vpack.c.bf16 %v122, %v121
  %v130 = vpack.c.bf16 %v124, %v123
  %131 = vset.pattern.permute.xlu0 1
  %132 = vperm.xlu0 %131, %v18
  %v133 = vpop.permute.xlu0 %132
  %135 = vset.pattern.permute.xlu0 1
  %136 = vperm.xlu0 %135, %v19
  %v137 = vpop.permute.xlu0 %136
  %139 = vset.pattern.permute.xlu0 1
  %140 = vperm.xlu0 %139, %v20
  %v141 = vpop.permute.xlu0 %140
  %143 = vset.pattern.permute.xlu0 1
  %144 = vperm.xlu0 %143, %v21
  %v145 = vpop.permute.xlu0 %144
  %v151 = vunpack.c.l.b16 %v125
  %v152 = vunpack.c.l.b16 %v126
  %v153 = vunpack.c.l.b16 %v127
  %v154 = vunpack.c.l.b16 %v128
  %v155 = vpack.c.b16 %v152, %v151
  %v156 = vpack.c.b16 %v154, %v153
  %vm157 = vcmask 261120
  %v159 = vsel %vm157, %v155, 0
  %v162 = vsel %vm157, %v156, 0
  %164 = vmatprep.subr.bf16.mxu0 0
  %165 = vmatpush1.bf16.msra.mxu0 %v129
  %166 = vmatprep.subr.bf16.mxu0 0
  %167 = vmatpush1.bf16.msra.mxu0 %v130
  %168 = vmatprep.subr.bf16.mxu0 0
  %169 = vmatpush1.bf16.msra.mxu0 0
  %170 = vmatprep.subr.bf16.mxu0 0
  %171 = vmatpush1.bf16.msra.mxu0 0
  %172 = vmatprep.subr.bf16.mxu0 0
  %173 = vmatpush1.bf16.msra.mxu0 0
  %174 = vmatprep.subr.bf16.mxu0 0
  %175 = vmatpush1.bf16.msra.mxu0 0
  %176 = vmatprep.subr.bf16.mxu0 0
  %177 = vmatpush1.bf16.msra.mxu0 0
  %178 = vmatprep.subr.bf16.mxu0 0
  %179 = vmatpush1.bf16.msra.mxu0 0
  %180 = vmatprep.subr.bf16.mxu0 0
  %181 = vmatpush1.bf16.msra.mxu0 0
  %182 = vmatprep.subr.bf16.mxu0 0
  %183 = vmatpush1.bf16.msra.mxu0 0
  %184 = vmatprep.subr.bf16.mxu0 0
  %185 = vmatpush1.bf16.msra.mxu0 0
  %186 = vmatprep.subr.bf16.mxu0 0
  %187 = vmatpush1.bf16.msra.mxu0 0
  %188 = vmatprep.subr.bf16.mxu0 0
  %189 = vmatpush1.bf16.msra.mxu0 0
  %190 = vmatprep.subr.bf16.mxu0 0
  %191 = vmatpush1.bf16.msra.mxu0 0
  %192 = vmatprep.subr.bf16.mxu0 0
  %193 = vmatpush1.bf16.msra.mxu0 0
  %194 = vmatprep.subr.bf16.mxu0 0
  %195 = vmatpush1.bf16.msra.mxu0 0
  %196 = vmatprep.mubr.bf16.mxu0 0
  %197 = vmatmul.mubr.bf16.gmra.mrb[0].mxu0 %v159
  %v198 = vpop.f32.mrb[0].mxu0
  %v199 = vadd.f32 %v133, %v198
  %v200 = vpop.f32.mrb[0].mxu0
  %v201 = vpop.f32.mrb[0].mxu0
  %v202 = vadd.f32 %v137, %v201
  %v203 = vpop.f32.mrb[0].mxu0
  %204 = vmatprep.mubr.bf16.mxu0 0
  %205 = vmatmul.mubr.bf16.gmra.mrb[0].mxu0 %v162
  %v206 = vpop.f32.mrb[0].mxu0
  %v207 = vadd.f32 %v141, %v206
  %v208 = vpop.f32.mrb[0].mxu0
  %v209 = vpop.f32.mrb[0].mxu0
  %v210 = vadd.f32 %v145, %v209
  %v211 = vpop.f32.mrb[0].mxu0
  %212 = vdwg.mxu0
  %v213 = vmax.f32 %v199, 0.0
  %v214 = vmax.f32 %v202, 0.0
  %v215 = vmax.f32 %v207, 0.0
  %v216 = vmax.f32 %v210, 0.0
  %s217 = scalar_lea.vmem %s2, 16
  %v218 = vld [vmem:[%s217] sm:$0xf]
  %v219 = vld [vmem:[%s217 + $0x4] sm:$0xf]
  %v220 = vld [vmem:[%s217 + $0x8] sm:$0xf]
  %v221 = vld [vmem:[%s217 + $0xc] sm:$0xf]
  %v222 = vpack.c.bf16 %v214, %v213
  %v223 = vpack.c.bf16 %v216, %v215
  %224 = vset.pattern.permute.xlu0 2
  %225 = vperm.xlu0 %224, %v18
  %v226 = vpop.permute.xlu0 %225
  %228 = vset.pattern.permute.xlu0 2
  %229 = vperm.xlu0 %228, %v19
  %v230 = vpop.permute.xlu0 %229
  %232 = vset.pattern.permute.xlu0 2
  %233 = vperm.xlu0 %232, %v20
  %v234 = vpop.permute.xlu0 %233
  %236 = vset.pattern.permute.xlu0 2
  %237 = vperm.xlu0 %236, %v21
  %v238 = vpop.permute.xlu0 %237
  %v244 = vunpack.c.l.b16 %v218
  %v245 = vunpack.c.l.b16 %v219
  %v246 = vunpack.c.l.b16 %v220
  %v247 = vunpack.c.l.b16 %v221
  %v248 = vpack.c.b16 %v245, %v244
  %v249 = vpack.c.b16 %v247, %v246
  %v251 = vsel %vm157, %v248, 0
  %v254 = vsel %vm157, %v249, 0
  %256 = vmatprep.subr.bf16.mxu0 0
  %257 = vmatpush1.bf16.msra.mxu0 %v222
  %258 = vmatprep.subr.bf16.mxu0 0
  %259 = vmatpush1.bf16.msra.mxu0 %v223
  %260 = vmatprep.subr.bf16.mxu0 0
  %261 = vmatpush1.bf16.msra.mxu0 0
  %262 = vmatprep.subr.bf16.mxu0 0
  %263 = vmatpush1.bf16.msra.mxu0 0
  %264 = vmatprep.subr.bf16.mxu0 0
  %265 = vmatpush1.bf16.msra.mxu0 0
  %266 = vmatprep.subr.bf16.mxu0 0
  %267 = vmatpush1.bf16.msra.mxu0 0
  %268 = vmatprep.subr.bf16.mxu0 0
  %269 = vmatpush1.bf16.msra.mxu0 0
  %270 = vmatprep.subr.bf16.mxu0 0
  %271 = vmatpush1.bf16.msra.mxu0 0
  %272 = vmatprep.subr.bf16.mxu0 0
  %273 = vmatpush1.bf16.msra.mxu0 0
  %274 = vmatprep.subr.bf16.mxu0 0
  %275 = vmatpush1.bf16.msra.mxu0 0
  %276 = vmatprep.subr.bf16.mxu0 0
  %277 = vmatpush1.bf16.msra.mxu0 0
  %278 = vmatprep.subr.bf16.mxu0 0
  %279 = vmatpush1.bf16.msra.mxu0 0
  %280 = vmatprep.subr.bf16.mxu0 0
  %281 = vmatpush1.bf16.msra.mxu0 0
  %282 = vmatprep.subr.bf16.mxu0 0
  %283 = vmatpush1.bf16.msra.mxu0 0
  %284 = vmatprep.subr.bf16.mxu0 0
  %285 = vmatpush1.bf16.msra.mxu0 0
  %286 = vmatprep.subr.bf16.mxu0 0
  %287 = vmatpush1.bf16.msra.mxu0 0
  %288 = vmatprep.mubr.bf16.mxu0 0
  %289 = vmatmul.mubr.bf16.gmra.mrb[0].mxu0 %v251
  %v290 = vpop.f32.mrb[0].mxu0
  %v291 = vadd.f32 %v226, %v290
  %v292 = vpop.f32.mrb[0].mxu0
  %v293 = vpop.f32.mrb[0].mxu0
  %v294 = vadd.f32 %v230, %v293
  %v295 = vpop.f32.mrb[0].mxu0
  %296 = vmatprep.mubr.bf16.mxu0 0
  %297 = vmatmul.mubr.bf16.gmra.mrb[0].mxu0 %v254
  %v298 = vpop.f32.mrb[0].mxu0
  %v299 = vadd.f32 %v234, %v298
  %v300 = vpop.f32.mrb[0].mxu0
  %v301 = vpop.f32.mrb[0].mxu0
  %v302 = vadd.f32 %v238, %v301
  %v303 = vpop.f32.mrb[0].mxu0
  %304 = vdwg.mxu0
  %v305 = vmax.f32 %v291, 0.0
  %v306 = vmax.f32 %v294, 0.0
  %v307 = vmax.f32 %v299, 0.0
  %v308 = vmax.f32 %v302, 0.0
  %309 = vset.pattern.permute.xlu0 3
  %310 = vperm.xlu0 %309, %v18
  %v311 = vpop.permute.xlu0 %310
  %313 = vset.pattern.permute.xlu0 3
  %314 = vperm.xlu0 %313, %v19
  %v315 = vpop.permute.xlu0 %314
  %317 = vset.pattern.permute.xlu0 3
  %318 = vperm.xlu0 %317, %v20
  %v319 = vpop.permute.xlu0 %318
  %321 = vset.pattern.permute.xlu0 3
  %322 = vperm.xlu0 %321, %v21
  %v323 = vpop.permute.xlu0 %322
  %v325 = vmul.f32 %v311, %v305
  %v326 = vmul.f32 %v315, %v306
  %v327 = vmul.f32 %v319, %v307
  %v328 = vmul.f32 %v323, %v308
  %v329 = vadd.f32 %v325, %v326
  %v330 = vadd.f32 %v329, %v327
  %v331 = vadd.f32 %v330, %v328
  %v332 = vrot.slane %v331, 4
  %v333 = vadd.f32 %v331, %v332
  %v334 = vrot.slane %v333, 2
  %v335 = vadd.f32 %v333, %v334
  %v336 = vrot.slane %v335, 1
  %v337 = vadd.f32 %v335, %v336
  %339 = vset.pattern.permute.xlu0 4
  %340 = vperm.xlu0 %339, %v22
  %v341 = vpop.permute.xlu0 %340
  %v343 = vadd.f32 %v337, %v341
  %344 = vst [vmem:[%s4] sm:$0x1] %v343
  // Predicated region
  $region18: #{critic_forward.1} parent=0 // pred_check
    _
  $region19: #{critic_forward.1} parent=0 // pred_check_branch
    %346 = sbr.rel (0) target = $region21
  $region20: #{critic_forward.1} parent=0 // pred_region
    _
  $region21: #{critic_forward.1} parent=0 // pred_fallthru
    _
  // Predicated region
  $region22: #{critic_forward.1} parent=0 // pred_check
    _
  $region23: #{critic_forward.1} parent=0 // pred_check_branch
    %348 = sbr.rel (0) target = $region25
  $region24: #{critic_forward.1} parent=0 // pred_region
    _
  $region25: #{critic_forward.1} parent=0 // pred_fallthru
    _

</llo_original>
